<compile_context>
chip_gen: v6e
topology: v6e:2x2x1
jax: 0.10.0
libtpu: 0.0.40
codegen_flags: <defaults>
</compile_context>

<pallas_src>
import jax
import jax.numpy as jnp
from jax.experimental import pallas as pl
from jax.experimental.pallas import tpu as pltpu


def _svm_kernel(x_ref, w_ref, b_ref, o_ref):
    # (TM, K) @ (K, 1) -> (TM, 1) matvec on the MXU with f32 accumulation.
    acc = jnp.dot(x_ref[...], w_ref[...], preferred_element_type=jnp.float32)
    res = acc - b_ref[0]  # scalar bias from SMEM (VPU broadcast-subtract)
    # Lane-dense store: transpose the (TM, 1) column into a (1, TM) row so the
    # output block is unmasked and 128x smaller in VMEM.
    o_ref[...] = jnp.transpose(res).astype(o_ref.dtype)


def _choose_block_b(B, K, itemsize, target_tile_bytes):
    """Batch tile rows: ~target_tile_bytes of x per buffer, 8-row granule."""
    if B <= 8:
        return B
    tm = (target_tile_bytes // (K * itemsize)) // 8 * 8
    tm = max(8, tm)
    if tm >= B:
        return B  # single tile covering the whole batch (full-dim block is legal)
    return tm


def svm_forward(x, w, b, *, target_tile_bytes=4 << 20):
    """MLmodelSVM forward: y_hat = (x @ w - b).reshape(-1, 1).

    x: (B, in_features) float32
    w: (in_features,)   float32
    b: (1,)             float32
    returns (B, 1) float32
    """
    B, K = x.shape
    dtype = x.dtype
    itemsize = jnp.dtype(dtype).itemsize

    w_col = jnp.reshape(w.astype(dtype), (K, 1))      # column for (TM,K)@(K,1)
    b_smem = jnp.reshape(jnp.asarray(b, dtype), (1,))  # scalar bias -> SMEM

    TM = _choose_block_b(B, K, itemsize, target_tile_bytes)
    num_tiles = pl.cdiv(B, TM)

    cost = pl.CostEstimate(
        flops=2 * B * K,
        transcendentals=0,
        bytes_accessed=(B * K + K + 1 + B) * itemsize,
    )

    out = pl.pallas_call(
        _svm_kernel,
        out_shape=jax.ShapeDtypeStruct((num_tiles, 1, TM), dtype),
        grid_spec=pl.GridSpec(
            grid=(num_tiles,),
            in_specs=[
                # x: batch-tiled, streamed (double-buffered by the pipeliner).
                pl.BlockSpec((TM, K), lambda i: (i, 0)),
                # w: VMEM-resident across all grid steps.
                pl.BlockSpec((K, 1), lambda i: (0, 0)),
                # b: scalar in SMEM (no padded VMEM tile, no double buffer).
                pl.BlockSpec(memory_space=pltpu.MemorySpace.SMEM),
            ],
            # Lane-dense output row per batch tile.
            out_specs=pl.BlockSpec((None, 1, TM), lambda i: (i, 0, 0)),
        ),
        compiler_params=pltpu.CompilerParams(
            dimension_semantics=("parallel",),
            vmem_limit_bytes=48 * 1024 * 1024,
        ),
        cost_estimate=cost,
    )(x, w_col, b_smem)

    # (num_tiles, 1, TM) -> (B, 1); garbage tail of a ragged last tile (if any)
    # is dropped here.  The kernel never reads the output block back, so the
    # out-of-bounds rows of the clipped last x tile are harmless.
    return out.reshape(-1, 1)[:B]


if __name__ == "__main__":
    # Small shapes consistent with the module: batch=8, in_features=32.
    B, IN_F = 8, 32

    key = jax.random.PRNGKey(0)
    kx, kw, kb = jax.random.split(key, 3)
    x = jax.random.normal(kx, (B, IN_F), dtype=jnp.float32)

    # MLmodelSVM initializes w and b to zeros; use random parameter values
    # here so the correctness check against the reference is non-trivial.
    w = jax.random.normal(kw, (IN_F,), dtype=jnp.float32)
    b = jax.random.normal(kb, (1,), dtype=jnp.float32)

    y = svm_forward(x, w, b)
    jax.block_until_ready(y)

    # Pure-JAX reference matching torch.mv(x, w) - b, reshape(-1, 1).
    y_ref = (x @ w - b).reshape(-1, 1)
    assert y.shape == (B, 1)
    assert jnp.allclose(y, y_ref, atol=1e-5, rtol=1e-5), "mismatch vs reference"

    # Also exercise the ragged-last-tile path (TM=8 forced, B=20 -> 3 tiles,
    # last tile has 4 valid rows).
    B2 = 20
    x2 = jax.random.normal(kx, (B2, IN_F), dtype=jnp.float32)
    y2 = svm_forward(x2, w, b, target_tile_bytes=1024)
    jax.block_until_ready(y2)
    y2_ref = (x2 @ w - b).reshape(-1, 1)
    assert y2.shape == (B2, 1)
    assert jnp.allclose(y2, y2_ref, atol=1e-5, rtol=1e-5), "ragged-tile mismatch"

    print("KERNEL_OK")
</pallas_src>

<mosaic_0001>
module attributes {stable_mosaic.version = 11 : i64} {
  func.func @_svm_kernel(%arg0: i32, %arg1: memref<8x32xf32, #tpu.memory_space<vmem>>, %arg2: memref<32x1xf32, #tpu.memory_space<vmem>>, %arg3: memref<1xf32, #tpu.memory_space<smem>>, %arg4: memref<1x1x8xf32, #tpu.memory_space<vmem>>) attributes {dimension_semantics = [#tpu.dimension_semantics<parallel>], iteration_bounds = array<i64: 1>, scalar_prefetch = 0 : i64, scratch_operands = 0 : i64, tpu.core_type = #tpu.core_type<tc>, window_params = [{transform_indices = @transform_0, window_bounds = array<i64: 8, 32>}, {pipeline_mode = #tpu.pipeline_mode<synchronous>, transform_indices = @transform_1, window_bounds = array<i64: 32, 1>}, {transform_indices = @transform_2, window_bounds = array<i64: 1>}, {transform_indices = @transform_3, window_bounds = array<i64: 1, 1, 8>}]} {
    %c0 = arith.constant 0 : index
    %c0_0 = arith.constant 0 : index
    %0 = vector.load %arg1[%c0, %c0_0] : memref<8x32xf32, #tpu.memory_space<vmem>>, vector<8x32xf32>
    %c0_1 = arith.constant 0 : index
    %c0_2 = arith.constant 0 : index
    %1 = vector.load %arg2[%c0_1, %c0_2] : memref<32x1xf32, #tpu.memory_space<vmem>>, vector<32x1xf32>
    %cst = arith.constant dense<0.000000e+00> : vector<8x1xf32>
    %2 = tpu.matmul %0, %1, %cst {dimension_numbers = #tpu.dot_dimension_numbers<[1], [0], [0], [1], [0, 0, 1, 1], [], []>} : vector<8x32xf32>, vector<32x1xf32>, vector<8x1xf32> -> vector<8x1xf32>
    %c0_3 = arith.constant 0 : index
    %3 = memref.load %arg3[%c0_3] : memref<1xf32, #tpu.memory_space<smem>>
    %4 = vector.broadcast %3 : f32 to vector<8x1xf32>
    %5 = arith.subf %2, %4 : vector<8x1xf32>
    %6 = tpu.transpose %5, [1, 0] : vector<8x1xf32> -> vector<1x8xf32>
    %c0_4 = arith.constant 0 : index
    %c0_5 = arith.constant 0 : index
    %c0_6 = arith.constant 0 : index
    %7 = vector.load %arg4[%c0_4, %c0_5, %c0_6] : memref<1x1x8xf32, #tpu.memory_space<vmem>>, vector<1x1x8xf32>
    %8 = vector.shape_cast %7 : vector<1x1x8xf32> to vector<1x8xf32>
    %9 = vector.shape_cast %6 : vector<1x8xf32> to vector<1x1x8xf32>
    tpu.vector_store %arg4[%c0_4, %c0_5, %c0_6], %9 {strides = array<i32>} : memref<1x1x8xf32, #tpu.memory_space<vmem>>, vector<1x1x8xf32>,
    return
  }
  func.func @transform_0(%arg0: i32) -> (i32, i32) {
    %c0_i32 = arith.constant 0 : i32
    %c0_i32_0 = arith.constant 0 : i32
    return %arg0, %c0_i32 : i32, i32
  }
  func.func @transform_1(%arg0: i32) -> (i32, i32) {
    %c0_i32 = arith.constant 0 : i32
    %c0_i32_0 = arith.constant 0 : i32
    %c0_i32_1 = arith.constant 0 : i32
    return %c0_i32, %c0_i32_0 : i32, i32
  }
  func.func @transform_2(%arg0: i32) -> i32 {
    %c0_i32 = arith.constant 0 : i32
    %c0_i32_0 = arith.constant 0 : i32
    return %c0_i32 : i32
  }
  func.func @transform_3(%arg0: i32) -> (i32, i32, i32) {
    %c0_i32 = arith.constant 0 : i32
    %c0_i32_0 = arith.constant 0 : i32
    %c0_i32_1 = arith.constant 0 : i32
    return %arg0, %c0_i32, %c0_i32_0 : i32, i32, i32
  }
}

</mosaic_0001>

<llo_original>
// kernel: tpu_custom_call.1
$region0: #{tpu_custom_call.1}
  #allocation0 [shape = 'u32[]', space=smem, size = 0x4, offset = 0x4, fixed_abs, tag = 'smem constant byte address 0x4 - core index']
  #allocation1 [shape = 'u32[144,128]{1,0:T(1,128)}', space=vmem, size = 0x12000, scoped, tag = 'internal scratch']
  #allocation2 [shape = 'f32[1]{0:T(128)S(6)}', space=smem, size = 0x200, scoped, tag = 'scoped memory for tpu_custom_call.1']
  %s0 = inlined_call_operand.vmem [shape: f32[8,32], index: 0, kind: input, shape index: {}]
  %s1 = inlined_call_operand.vmem [shape: f32[32,1], index: 1, kind: input, shape index: {}]
  %s2 = inlined_call_operand.<no memory space> [shape: f32[1], index: 2, kind: input, shape index: {}]
  %s3 = inlined_call_operand.hbm [shape: f32[1,1,8], index: 3, kind: output, shape index: {}]
  %s4 = sld [smem:[#allocation0]]
  $region22: #{tpu_custom_call.1} parent=0
    _
  %s6 = ssub.s32 1, %s4
  %s7 = scalar_select 0, %s6, %s4
  %8 = sst [smem:[#allocation2]] %s2
  $region1: #{tpu_custom_call.1} parent=0
    #allocation3 [shape = 'u8[512]{0}', space=vmem, size = 0x400, scoped, tag = 'output window, operand 0, single buffered']
    #allocation4 [shape = 's32[1]{0}', space=sflag, size = 0x4, scoped, tag = 'scoped memory for tpu_custom_call.1']
    %9 = vsyncpa [#allocation4], 0
    // Predicated region
    $region2: #{tpu_custom_call.1} parent=1 // pred_check
      _
    $region3: #{tpu_custom_call.1} parent=1 // pred_check_branch
      %11 = sbr.rel (0) target = $region5
    $region4: #{tpu_custom_call.1} parent=1 // pred_region
      _
    $region5: #{tpu_custom_call.1} parent=1 // pred_fallthru
      _
    // Predicated region
    $region6: #{tpu_custom_call.1} parent=1 // pred_check
      _
    $region7: #{tpu_custom_call.1} parent=1 // pred_check_branch
      %13 = sbr.rel (0) target = $region9
    $region8: #{tpu_custom_call.1} parent=1 // pred_region
      _
    $region9: #{tpu_custom_call.1} parent=1 // pred_fallthru
      _
    // Predicated region
    $region10: #{tpu_custom_call.1} parent=1 // pred_check
      _
    $region11: #{tpu_custom_call.1} parent=1 // pred_check_branch
      %15 = sbr.rel (0) target = $region13
    $region12: #{tpu_custom_call.1} parent=1 // pred_region
      _
    $region13: #{tpu_custom_call.1} parent=1 // pred_fallthru
      _
    %v16 = vld [vmem:[%s0] sm:$0xff]
    %v17 = vld [vmem:[%s1] sm:$0xff]
    %v18 = vld [vmem:[%s1 + $0x8] sm:$0xff]
    %v19 = vld [vmem:[%s1 + $0x10] sm:$0xff]
    %v20 = vld [vmem:[%s1 + $0x18] sm:$0xff]
    %vm21 = vcmask 261120
    %v23 = vsel %vm21, %v16, 0
    %25 = vmatprep.subr.mxu0 0.0
    %26 = vmatpush1.msra.mxu0 0.0
    %27 = vmatprep.subr.mxu0 0.0
    %28 = vmatpush1.msra.mxu0 0.0
    %29 = vmatprep.subr.mxu0 0.0
    %30 = vmatpush1.msra.mxu0 0.0
    %31 = vmatprep.subr.mxu0 0.0
    %32 = vmatpush1.msra.mxu0 0.0
    %33 = vmatprep.subr.mxu0 0.0
    %34 = vmatpush1.msra.mxu0 0.0
    %35 = vmatprep.subr.mxu0 0.0
    %36 = vmatpush1.msra.mxu0 0.0
    %37 = vmatprep.subr.mxu0 0.0
    %38 = vmatpush1.msra.mxu0 0.0
    %39 = vmatprep.subr.mxu0 0.0
    %40 = vmatpush1.msra.mxu0 0.0
    %41 = vmatprep.subr.mxu0 0.0
    %42 = vmatpush1.msra.mxu0 0.0
    %43 = vmatprep.subr.mxu0 0.0
    %44 = vmatpush1.msra.mxu0 0.0
    %45 = vmatprep.subr.mxu0 0.0
    %46 = vmatpush1.msra.mxu0 0.0
    %47 = vmatprep.subr.mxu0 0.0
    %48 = vmatpush1.msra.mxu0 0.0
    %49 = vmatprep.subr.mxu0 0.0
    %50 = vmatpush1.msra.mxu0 %v20
    %51 = vmatprep.subr.mxu0 0.0
    %52 = vmatpush1.msra.mxu0 %v19
    %53 = vmatprep.subr.mxu0 0.0
    %54 = vmatpush1.msra.mxu0 %v18
    %55 = vmatprep.subr.mxu0 0.0
    %56 = vmatpush1.msra.mxu0 %v17
    %57 = vmatprep.subr.mxu0 0.0
    %58 = vmatpush2.msra.mxu0 0.0
    %59 = vmatprep.subr.mxu0 0.0
    %60 = vmatpush2.msra.mxu0 0.0
    %61 = vmatprep.subr.mxu0 0.0
    %62 = vmatpush2.msra.mxu0 0.0
    %63 = vmatprep.subr.mxu0 0.0
    %64 = vmatpush2.msra.mxu0 0.0
    %65 = vmatprep.subr.mxu0 0.0
    %66 = vmatpush2.msra.mxu0 0.0
    %67 = vmatprep.subr.mxu0 0.0
    %68 = vmatpush2.msra.mxu0 0.0
    %69 = vmatprep.subr.mxu0 0.0
    %70 = vmatpush2.msra.mxu0 0.0
    %71 = vmatprep.subr.mxu0 0.0
    %72 = vmatpush2.msra.mxu0 0.0
    %73 = vmatprep.subr.mxu0 0.0
    %74 = vmatpush2.msra.mxu0 0.0
    %75 = vmatprep.subr.mxu0 0.0
    %76 = vmatpush2.msra.mxu0 0.0
    %77 = vmatprep.subr.mxu0 0.0
    %78 = vmatpush2.msra.mxu0 0.0
    %79 = vmatprep.subr.mxu0 0.0
    %80 = vmatpush2.msra.mxu0 0.0
    %81 = vmatprep.subr.mxu0 0.0
    %82 = vmatpush2.msra.mxu0 0.0
    %83 = vmatprep.subr.mxu0 0.0
    %84 = vmatpush2.msra.mxu0 0.0
    %85 = vmatprep.subr.mxu0 0.0
    %86 = vmatpush2.msra.mxu0 0.0
    %87 = vmatprep.subr.mxu0 0.0
    %88 = vmatpush2.msra.mxu0 0.0
    %89 = vmatprep.mubr.f32.mxu0 0.0
    %90 = vmatmul.mubr.f32.gmra.mxu0 %v23
    %v91 = vpop.f32.mrf.mxu0
    %v92 = vadd.f32 0.0, %v91
    %v93 = vpop.f32.mrf.mxu0
    %94 = vdwg.mxu0
    %s95 = sld [smem:[#allocation2]]
    %v96 = vstv %s95
    %v97 = vsub.f32 %v92, %v96
    %98 = vxpose.xlu0.b32.start [1/16] %v97, 128
    %99 = vxpose.xlu0.b32.cont [2/16] 0.0, 128
    %100 = vxpose.xlu0.b32.cont [3/16] 0.0, 128
    %101 = vxpose.xlu0.b32.cont [4/16] 0.0, 128
    %102 = vxpose.xlu0.b32.cont [5/16] 0.0, 128
    %103 = vxpose.xlu0.b32.cont [6/16] 0.0, 128
    %104 = vxpose.xlu0.b32.cont [7/16] 0.0, 128
    %105 = vxpose.xlu0.b32.cont [8/16] 0.0, 128
    %106 = vxpose.xlu0.b32.cont [9/16] 0.0, 128
    %107 = vxpose.xlu0.b32.cont [10/16] 0.0, 128
    %108 = vxpose.xlu0.b32.cont [11/16] 0.0, 128
    %109 = vxpose.xlu0.b32.cont [12/16] 0.0, 128
    %110 = vxpose.xlu0.b32.cont [13/16] 0.0, 128
    %111 = vxpose.xlu0.b32.cont [14/16] 0.0, 128
    %112 = vxpose.xlu0.b32.cont [15/16] 0.0, 128
    %113 = vxpose.xlu0.b32.end [16/16] 0.0, 128
    %v114 = vpop.trf.xlu0
    %v115 = vpop.trf.xlu0
    %v116 = vpop.trf.xlu0
    %v117 = vpop.trf.xlu0
    %v118 = vpop.trf.xlu0
    %v119 = vpop.trf.xlu0
    %v120 = vpop.trf.xlu0
    %v121 = vpop.trf.xlu0
    %v122 = vpop.trf.xlu0
    %v123 = vpop.trf.xlu0
    %v124 = vpop.trf.xlu0
    %v125 = vpop.trf.xlu0
    %v126 = vpop.trf.xlu0
    %v127 = vpop.trf.xlu0
    %v128 = vpop.trf.xlu0
    %v129 = vpop.trf.xlu0
    %vm130 = vcmask 57344
    %131 = vst.msk [vmem:[#allocation3] sm:$0x1] %vm130, %v114
    // Predicated region
    $region14: #{tpu_custom_call.1} parent=1 // pred_check
      _
    $region15: #{tpu_custom_call.1} parent=1 // pred_check_branch
      %133 = sbr.rel (0) target = $region17
    $region16: #{tpu_custom_call.1} parent=1 // pred_region
      %s135 = ssub.s32 16, 16
      %136 = vsyncadd [#allocation4], %s135
      %s138 = sshll.u32 [#allocation3], 4
      %s139 = int_to_ptr.vmem [resolvable:$true] %s138
      %141 = dma.vmem_to_hbm [thread:$0]  %s139, 16, %s3, [#allocation4]
    $region17: #{tpu_custom_call.1} parent=1 // pred_fallthru
      _
    // Predicated region
    $region18: #{tpu_custom_call.1} parent=1 // pred_check
      _
    $region19: #{tpu_custom_call.1} parent=1 // pred_check_branch
      %143 = sbr.rel (0) target = $region21
    $region20: #{tpu_custom_call.1} parent=1 // pred_region
      %144 = dma.done [#allocation4], 16
    $region21: #{tpu_custom_call.1} parent=1 // pred_fallthru
      _
    %145 = vsyncpa [#allocation4], 1

</llo_original>
